<compile_context>
chip_gen: v5e
topology: v5e:2x2
jax: 0.10.0
libtpu: 0.0.40
codegen_flags: <defaults>
</compile_context>

<pallas_src>
import functools

import jax
import jax.numpy as jnp
from jax import lax
from jax.experimental import pallas as pl
from jax.experimental.pallas import tpu as pltpu


def _round_up(x, m):
    return ((x + m - 1) // m) * m


def _vmem_budgets():
    """(streaming buffer budget, vmem_limit_bytes), per TPU generation.

    Conservative (v7x-safe) defaults; raised on chips with ~128 MiB VMEM
    (v5e / v6e) so the seq tile stays large and near the HBM roofline."""
    stream_budget, vmem_limit = 8 * 2**20, 32 * 2**20
    try:
        info = pltpu.get_tpu_info()
        cap = getattr(info, "vmem_capacity_bytes", None)
        if cap is not None and cap >= 100 * 2**20:
            stream_budget, vmem_limit = 24 * 2**20, 64 * 2**20
    except Exception:
        pass
    return stream_budget, vmem_limit


def _choose_tiles(seq_max, feat_flat, itemsize, budget_bytes):
    """Pick (seq tile, feature tile, n_feature_tiles).

    The feature (lane) axis is tiled — rather than shrinking the seq tile
    below ~512 rows — when F is large, and split once more when F >= 1024 so
    the parallel feature axis doubles as the v7x megacore split."""
    tile_f = feat_flat

    def stream_bytes(ts, tf):
        return 4 * ts * tf * itemsize          # 2 inputs x 2 pipeline buffers

    # Halve tile_f (stays a multiple of 128 and a divisor of F) while a
    # 512-row seq tile would not fit the streaming budget.
    while (tile_f % 256 == 0) and stream_bytes(512, tile_f) > budget_bytes:
        tile_f //= 2
    # Split once for megacore / per-step amortization when F is large.
    if tile_f == feat_flat and feat_flat >= 1024 and feat_flat % 256 == 0:
        tile_f = feat_flat // 2
    n_feat = feat_flat // tile_f
    if feat_flat % tile_f != 0:                # safety net (shouldn't trigger)
        tile_f, n_feat = feat_flat, 1

    per_row = max(1, 4 * tile_f * itemsize)
    tile_s = (budget_bytes // per_row) // 8 * 8
    tile_s = int(max(8, min(tile_s, 1024, _round_up(seq_max, 8))))
    return tile_s, tile_f, n_feat


# ----------------------------------------------------------------------------
# Stage 1: streaming seq-sum (mean pooling, up to the 1/S scale) kernel.
# ----------------------------------------------------------------------------
def _pool_sum_kernel(src_ref, trg_ref, src_out, trg_out, *, tile, seq_src, seq_trg):
    s = pl.program_id(1)                       # seq (reduction) axis, innermost

    @pl.when(s == 0)
    def _init():
        src_out[...] = jnp.zeros_like(src_out)
        trg_out[...] = jnp.zeros_like(trg_out)

    groups = tile // 8

    def group_sum(x_f32):                      # (tile, f) -> (8, f), VPU-only adds
        return jnp.sum(x_f32.reshape(groups, 8, x_f32.shape[-1]), axis=0)

    def accumulate(block_ref, out_ref, seq_len):
        full_blocks = seq_len // tile          # static
        rem = seq_len % tile                   # static

        if full_blocks > 0:
            @pl.when(s < full_blocks)          # mask-free fast path (full tiles)
            def _full():
                out_ref[...] += group_sum(block_ref[...].astype(jnp.float32))

        if rem > 0:
            @pl.when(s == full_blocks)         # single partial tile: select-mask
            def _partial():
                rows = lax.broadcasted_iota(jnp.int32, (tile, 1), 0)
                x = jnp.where(rows < rem, block_ref[...].astype(jnp.float32), 0.0)
                out_ref[...] += group_sum(x)
        # Steps with s >= ceil(seq_len / tile) do no work at all (skipped).

    accumulate(src_ref, src_out, seq_src)
    accumulate(trg_ref, trg_out, seq_trg)


# ----------------------------------------------------------------------------
# Stage 2: finalize — 8->1 reduce, mean scale, relayout, fused MLP.
# ----------------------------------------------------------------------------
def _finalize_mlp_kernel(src_sum_ref, trg_sum_ref, w1a_ref, w1b_ref, b1_ref,
                         wmv_ref, bmv_ref, out_ref, *,
                         inv_seq_src, inv_seq_trg, batch, feat):
    h_src_flat = jnp.sum(src_sum_ref[...], axis=0, keepdims=True) * jnp.float32(inv_seq_src)
    h_trg_flat = jnp.sum(trg_sum_ref[...], axis=0, keepdims=True) * jnp.float32(inv_seq_trg)

    # (1, B*2H) -> (B, 2H) via static lane slices; negligible at small B and
    # runs exactly once (outside the streaming kernel's critical path).
    # TODO(synk): for large batch, replace with a strided-copy/einshape relayout.
    h_src = jnp.concatenate(
        [h_src_flat[:, i * feat:(i + 1) * feat] for i in range(batch)], axis=0)
    h_trg = jnp.concatenate(
        [h_trg_flat[:, i * feat:(i + 1) * feat] for i in range(batch)], axis=0)

    # h_z = tanh([h_src | h_trg] @ W1.T + b1), without the lane concat.
    h_z = jnp.tanh(
        jnp.dot(h_src, w1a_ref[...], preferred_element_type=jnp.float32)
        + jnp.dot(h_trg, w1b_ref[...], preferred_element_type=jnp.float32)
        + b1_ref[...])

    # Fused mu / log_var projection -> (B, 2L).
    out_ref[...] = (
        jnp.dot(h_z, wmv_ref[...], preferred_element_type=jnp.float32)
        + bmv_ref[...]).astype(out_ref.dtype)


# ----------------------------------------------------------------------------
# Parameter prep + forward wrapper.
# ----------------------------------------------------------------------------
def prepare_params(params):
    """One-time weight layout prep (hoisted out of the per-call path).

    params follow PyTorch nn.Linear convention: w1 (L, 4H), b1 (L,),
    wmu/wvar (L, L), bmu/bvar (L,)."""
    w1t = jnp.asarray(params["w1"], jnp.float32).T               # (4H, L)
    two_h = w1t.shape[0] // 2
    return {
        "w1a": w1t[:two_h],                                      # (2H, L)
        "w1b": w1t[two_h:],                                      # (2H, L)
        "b1": jnp.asarray(params["b1"], jnp.float32)[None, :],   # (1, L)
        "wmv": jnp.concatenate(
            [jnp.asarray(params["wmu"], jnp.float32).T,
             jnp.asarray(params["wvar"], jnp.float32).T], axis=1),  # (L, 2L)
        "bmv": jnp.concatenate(
            [jnp.asarray(params["bmu"], jnp.float32),
             jnp.asarray(params["bvar"], jnp.float32)])[None, :],   # (1, 2L)
    }


def approximate_posterior_forward(src, encoded_src, trg, encoded_trg, prepared,
                                  *, seq_tile=None):
    """encoded_src: (S_src, B, 2H), encoded_trg: (S_trg, B, 2H), f32 or bf16.
    Returns (mu, log_var), each (B, L) f32."""
    del src, trg  # unused by the reference forward

    s_src, b, two_h = encoded_src.shape
    s_trg, b2, two_h2 = encoded_trg.shape
    assert b == b2 and two_h == two_h2
    assert s_src > 0 and s_trg > 0, "sequence lengths must be positive (mean over seq)"
    latent = prepared["b1"].shape[1]
    feat_flat = b * two_h

    # Free reshapes (collapse contiguous minor dims): lane-dense (S, B*2H).
    src_flat = encoded_src.reshape(s_src, feat_flat)
    trg_flat = encoded_trg.reshape(s_trg, feat_flat)

    stream_budget, vmem_limit = _vmem_budgets()
    itemsize = jnp.dtype(encoded_src.dtype).itemsize
    tile_s, tile_f, n_feat = _choose_tiles(max(s_src, s_trg), feat_flat,
                                           itemsize, stream_budget)
    if seq_tile is not None:
        tile_s = int(min(_round_up(int(seq_tile), 8),
                         _round_up(max(s_src, s_trg), 8)))

    n_src = pl.cdiv(s_src, tile_s)
    n_trg = pl.cdiv(s_trg, tile_s)
    n_seq = max(n_src, n_trg)

    pool_kernel = functools.partial(
        _pool_sum_kernel, tile=tile_s, seq_src=s_src, seq_trg=s_trg)

    src_sum, trg_sum = pl.pallas_call(
        pool_kernel,
        out_shape=(jax.ShapeDtypeStruct((8, feat_flat), jnp.float32),
                   jax.ShapeDtypeStruct((8, feat_flat), jnp.float32)),
        grid=(n_feat, n_seq),
        in_specs=[
            pl.BlockSpec((tile_s, tile_f),
                         lambda f, s: (jnp.minimum(s, n_src - 1), f)),
            pl.BlockSpec((tile_s, tile_f),
                         lambda f, s: (jnp.minimum(s, n_trg - 1), f)),
        ],
        out_specs=(
            pl.BlockSpec((8, tile_f), lambda f, s: (0, f)),
            pl.BlockSpec((8, tile_f), lambda f, s: (0, f)),
        ),
        compiler_params=pltpu.CompilerParams(
            dimension_semantics=("parallel", "arbitrary"),
            vmem_limit_bytes=vmem_limit,
        ),
    )(src_flat, trg_flat)

    mlp_kernel = functools.partial(
        _finalize_mlp_kernel,
        inv_seq_src=1.0 / s_src, inv_seq_trg=1.0 / s_trg, batch=b, feat=two_h)

    out = pl.pallas_call(
        mlp_kernel,
        out_shape=jax.ShapeDtypeStruct((b, 2 * latent), jnp.float32),
        compiler_params=pltpu.CompilerParams(vmem_limit_bytes=vmem_limit),
    )(src_sum, trg_sum, prepared["w1a"], prepared["w1b"], prepared["b1"],
      prepared["wmv"], prepared["bmv"])

    mu = out[:, :latent]
    log_var = out[:, latent:]
    return mu, log_var


# ----------------------------------------------------------------------------
# Reference, synthetic params, and self-test.
# ----------------------------------------------------------------------------
def init_params(key, hidden_size, latent_size):
    """Deterministic synthetic parameters in PyTorch nn.Linear shapes."""
    in1 = 4 * hidden_size
    k = jax.random.split(key, 6)

    def uniform(k_, shape, fan_in):
        bound = 1.0 / jnp.sqrt(fan_in)
        return jax.random.uniform(k_, shape, jnp.float32, -bound, bound)

    return {
        "w1": uniform(k[0], (latent_size, in1), in1),
        "b1": uniform(k[1], (latent_size,), in1),
        "wmu": uniform(k[2], (latent_size, latent_size), latent_size),
        "bmu": uniform(k[3], (latent_size,), latent_size),
        "wvar": uniform(k[4], (latent_size, latent_size), latent_size),
        "bvar": uniform(k[5], (latent_size,), latent_size),
    }


def _reference(encoded_src, encoded_trg, params):
    """Pure-JAX reference mirroring the PyTorch forward."""
    h_src = jnp.mean(encoded_src.astype(jnp.float32), axis=0)   # (B, 2H)
    h_trg = jnp.mean(encoded_trg.astype(jnp.float32), axis=0)   # (B, 2H)
    h = jnp.concatenate([h_src, h_trg], axis=1)                 # (B, 4H)
    h_z = jnp.tanh(h @ params["w1"].T + params["b1"])
    mu = h_z @ params["wmu"].T + params["bmu"]
    log_var = h_z @ params["wvar"].T + params["bvar"]
    return mu, log_var


if __name__ == "__main__":
    hidden_size = 32          # bidirectional encoder -> feature dim 2H = 64
    latent_size = 32
    batch = 2
    seq_src, seq_trg = 24, 36

    key = jax.random.PRNGKey(0)
    k_params, k_src, k_trg = jax.random.split(key, 3)

    params = init_params(k_params, hidden_size, latent_size)
    prepared = prepare_params(params)   # one-time weight layout prep

    encoded_src = jax.random.normal(k_src, (seq_src, batch, 2 * hidden_size), jnp.float32)
    encoded_trg = jax.random.normal(k_trg, (seq_trg, batch, 2 * hidden_size), jnp.float32)

    # src / trg token tensors are unused by the forward; pass placeholders.
    src = jnp.zeros((seq_src, batch), jnp.int32)
    trg = jnp.zeros((seq_trg, batch), jnp.int32)

    mu_ref, log_var_ref = _reference(encoded_src, encoded_trg, params)

    # (a) default tiling (single-step seq grid at these small sizes).
    mu, log_var = approximate_posterior_forward(src, encoded_src, trg, encoded_trg, prepared)
    jax.block_until_ready((mu, log_var))
    assert mu.shape == (batch, latent_size) and log_var.shape == (batch, latent_size)
    assert jnp.allclose(mu, mu_ref, atol=1e-5, rtol=1e-5)
    assert jnp.allclose(log_var, log_var_ref, atol=1e-5, rtol=1e-5)

    # (b) forced small tile: multi-step grid, full + partial tiles, mismatched
    #     tile counts (exercises fast path, masked path, and step skipping).
    mu2, log_var2 = approximate_posterior_forward(
        src, encoded_src, trg, encoded_trg, prepared, seq_tile=16)
    jax.block_until_ready((mu2, log_var2))
    assert jnp.allclose(mu2, mu_ref, atol=1e-5, rtol=1e-5)
    assert jnp.allclose(log_var2, log_var_ref, atol=1e-5, rtol=1e-5)

    # (c) bf16 streamed inputs (halves HBM bytes; accumulation stays f32).
    enc_src_bf16 = encoded_src.astype(jnp.bfloat16)
    enc_trg_bf16 = encoded_trg.astype(jnp.bfloat16)
    mu3_ref, log_var3_ref = _reference(enc_src_bf16, enc_trg_bf16, params)
    mu3, log_var3 = approximate_posterior_forward(
        src, enc_src_bf16, trg, enc_trg_bf16, prepared)
    jax.block_until_ready((mu3, log_var3))
    assert jnp.allclose(mu3, mu3_ref, atol=1e-4, rtol=1e-4)
    assert jnp.allclose(log_var3, log_var3_ref, atol=1e-4, rtol=1e-4)

    print("KERNEL_OK")
</pallas_src>

<mosaic_0001>
module attributes {stable_mosaic.version = 11 : i64} {
  func.func @_pool_sum_kernel(%arg0: i32, %arg1: i32, %arg2: memref<40x128xf32, #tpu.memory_space<vmem>>, %arg3: memref<40x128xf32, #tpu.memory_space<vmem>>, %arg4: memref<8x128xf32, #tpu.memory_space<vmem>>, %arg5: memref<8x128xf32, #tpu.memory_space<vmem>>) attributes {dimension_semantics = [#tpu.dimension_semantics<parallel>, #tpu.dimension_semantics<arbitrary>], iteration_bounds = array<i64: 1, 1>, scalar_prefetch = 0 : i64, scratch_operands = 0 : i64, tpu.core_type = #tpu.core_type<tc>, window_params = [{transform_indices = @transform_0, window_bounds = array<i64: 40, 128>}, {transform_indices = @transform_1, window_bounds = array<i64: 40, 128>}, {transform_indices = @transform_2, window_bounds = array<i64: 8, 128>}, {transform_indices = @transform_3, window_bounds = array<i64: 8, 128>}]} {
    %c0_i32 = arith.constant 0 : i32
    %0 = arith.cmpi eq, %arg1, %c0_i32 : i32
    %1 = arith.extui %0 : i1 to i32
    %c0_i32_0 = arith.constant 0 : i32
    %2 = arith.cmpi ne, %1, %c0_i32_0 : i32
    scf.if %2 {
      %cst = arith.constant 0.000000e+00 : f32
      %9 = vector.broadcast %cst : f32 to vector<8x128xf32>
      %c0 = arith.constant 0 : index
      %c0_5 = arith.constant 0 : index
      %10 = vector.load %arg4[%c0, %c0_5] : memref<8x128xf32, #tpu.memory_space<vmem>>, vector<8x128xf32>
      tpu.vector_store %arg4[%c0, %c0_5], %9 {strides = array<i32>} : memref<8x128xf32, #tpu.memory_space<vmem>>, vector<8x128xf32>,
      %cst_6 = arith.constant 0.000000e+00 : f32
      %11 = vector.broadcast %cst_6 : f32 to vector<8x128xf32>
      %c0_7 = arith.constant 0 : index
      %c0_8 = arith.constant 0 : index
      %12 = vector.load %arg5[%c0_7, %c0_8] : memref<8x128xf32, #tpu.memory_space<vmem>>, vector<8x128xf32>
      tpu.vector_store %arg5[%c0_7, %c0_8], %11 {strides = array<i32>} : memref<8x128xf32, #tpu.memory_space<vmem>>, vector<8x128xf32>,
    } else {
    }
    %c0_i32_1 = arith.constant 0 : i32
    %3 = arith.cmpi eq, %arg1, %c0_i32_1 : i32
    %4 = arith.extui %3 : i1 to i32
    %c0_i32_2 = arith.constant 0 : i32
    %5 = arith.cmpi ne, %4, %c0_i32_2 : i32
    scf.if %5 {
      %9 = tpu.iota {dimensions = array<i32: 0>} : vector<40x1xi32>
      %c24_i32 = arith.constant 24 : i32
      %10 = vector.broadcast %c24_i32 : i32 to vector<40x1xi32>
      %11 = arith.cmpi slt, %9, %10 : vector<40x1xi32>
      %c0 = arith.constant 0 : index
      %c0_5 = arith.constant 0 : index
      %12 = vector.load %arg2[%c0, %c0_5] : memref<40x128xf32, #tpu.memory_space<vmem>>, vector<40x128xf32>
      %cst = arith.constant 0.000000e+00 : f32
      %13 = vector.shape_cast %11 : vector<40x1xi1> to vector<40x1xi1>
      %14 = vector.broadcast %13 : vector<40x1xi1> to vector<40x128xi1>
      %15 = vector.broadcast %cst : f32 to vector<40x128xf32>
      %16 = arith.select %14, %12, %15 : vector<40x128xi1>, vector<40x128xf32>
      %c0_6 = arith.constant 0 : index
      %c0_7 = arith.constant 0 : index
      %17 = vector.load %arg4[%c0_6, %c0_7] : memref<8x128xf32, #tpu.memory_space<vmem>>, vector<8x128xf32>
      %18 = vector.shape_cast %16 : vector<40x128xf32> to vector<5x8x128xf32>
      %cst_8 = arith.constant dense<0.000000e+00> : vector<8x128xf32>
      %19 = vector.multi_reduction <add>, %18, %cst_8 [0] : vector<5x8x128xf32> to vector<8x128xf32>
      %20 = arith.addf %17, %19 : vector<8x128xf32>
      %c0_9 = arith.constant 0 : index
      %c0_10 = arith.constant 0 : index
      %21 = vector.load %arg4[%c0_9, %c0_10] : memref<8x128xf32, #tpu.memory_space<vmem>>, vector<8x128xf32>
      tpu.vector_store %arg4[%c0_9, %c0_10], %20 {strides = array<i32>} : memref<8x128xf32, #tpu.memory_space<vmem>>, vector<8x128xf32>,
    } else {
    }
    %c0_i32_3 = arith.constant 0 : i32
    %6 = arith.cmpi eq, %arg1, %c0_i32_3 : i32
    %7 = arith.extui %6 : i1 to i32
    %c0_i32_4 = arith.constant 0 : i32
    %8 = arith.cmpi ne, %7, %c0_i32_4 : i32
    scf.if %8 {
      %9 = tpu.iota {dimensions = array<i32: 0>} : vector<40x1xi32>
      %c36_i32 = arith.constant 36 : i32
      %10 = vector.broadcast %c36_i32 : i32 to vector<40x1xi32>
      %11 = arith.cmpi slt, %9, %10 : vector<40x1xi32>
      %c0 = arith.constant 0 : index
      %c0_5 = arith.constant 0 : index
      %12 = vector.load %arg3[%c0, %c0_5] : memref<40x128xf32, #tpu.memory_space<vmem>>, vector<40x128xf32>
      %cst = arith.constant 0.000000e+00 : f32
      %13 = vector.shape_cast %11 : vector<40x1xi1> to vector<40x1xi1>
      %14 = vector.broadcast %13 : vector<40x1xi1> to vector<40x128xi1>
      %15 = vector.broadcast %cst : f32 to vector<40x128xf32>
      %16 = arith.select %14, %12, %15 : vector<40x128xi1>, vector<40x128xf32>
      %c0_6 = arith.constant 0 : index
      %c0_7 = arith.constant 0 : index
      %17 = vector.load %arg5[%c0_6, %c0_7] : memref<8x128xf32, #tpu.memory_space<vmem>>, vector<8x128xf32>
      %18 = vector.shape_cast %16 : vector<40x128xf32> to vector<5x8x128xf32>
      %cst_8 = arith.constant dense<0.000000e+00> : vector<8x128xf32>
      %19 = vector.multi_reduction <add>, %18, %cst_8 [0] : vector<5x8x128xf32> to vector<8x128xf32>
      %20 = arith.addf %17, %19 : vector<8x128xf32>
      %c0_9 = arith.constant 0 : index
      %c0_10 = arith.constant 0 : index
      %21 = vector.load %arg5[%c0_9, %c0_10] : memref<8x128xf32, #tpu.memory_space<vmem>>, vector<8x128xf32>
      tpu.vector_store %arg5[%c0_9, %c0_10], %20 {strides = array<i32>} : memref<8x128xf32, #tpu.memory_space<vmem>>, vector<8x128xf32>,
    } else {
    }
    return
  }
  func.func @transform_0(%arg0: i32, %arg1: i32) -> (i32, i32) {
    %c0_i32 = arith.constant 0 : i32
    %0 = arith.minsi %arg1, %c0_i32 : i32
    %c0_i32_0 = arith.constant 0 : i32
    return %0, %arg0 : i32, i32
  }
  func.func @transform_1(%arg0: i32, %arg1: i32) -> (i32, i32) {
    %c0_i32 = arith.constant 0 : i32
    %0 = arith.minsi %arg1, %c0_i32 : i32
    %c0_i32_0 = arith.constant 0 : i32
    return %0, %arg0 : i32, i32
  }
  func.func @transform_2(%arg0: i32, %arg1: i32) -> (i32, i32) {
    %c0_i32 = arith.constant 0 : i32
    %c0_i32_0 = arith.constant 0 : i32
    return %c0_i32, %arg0 : i32, i32
  }
  func.func @transform_3(%arg0: i32, %arg1: i32) -> (i32, i32) {
    %c0_i32 = arith.constant 0 : i32
    %c0_i32_0 = arith.constant 0 : i32
    return %c0_i32, %arg0 : i32, i32
  }
}

</mosaic_0001>

<llo_original>
// kernel: tpu_custom_call.1
$region0: #{tpu_custom_call.1}
  #allocation0 [shape = 'u32[]', space=smem, size = 0x4, offset = 0x4, fixed_abs, tag = 'smem constant byte address 0x4 - core index']
  #allocation1 [shape = 'u32[72,128]{1,0:T(1,128)}', space=vmem, size = 0x9000, scoped, tag = 'internal scratch']
  %s0 = inlined_call_operand.hbm [shape: f32[24,128], index: 0, kind: input, shape index: {}]
  %s1 = inlined_call_operand.hbm [shape: f32[36,128], index: 1, kind: input, shape index: {}]
  %s2 = inlined_call_operand.hbm [shape: f32[8,128], index: 2, kind: output, shape index: {0}]
  %s3 = inlined_call_operand.hbm [shape: f32[8,128], index: 3, kind: output, shape index: {1}]
  %4 = xla_tuple %s2, %s3
  %s5 = sld [smem:[#allocation0]]
  $region38: #{tpu_custom_call.1} parent=0
    _
  %s7 = ssub.s32 1, %s5
  %s8 = scalar_select 0, %s7, %s5
  $region1: #{tpu_custom_call.1} parent=0
    #allocation2 [shape = 'u8[20480]{0}', space=vmem, size = 0x5000, scoped, tag = 'input window, operand 0, single buffered']
    #allocation3 [shape = 's32[1]{0}', space=sflag, size = 0x4, scoped, tag = 'scoped memory for tpu_custom_call.1']
    #allocation4 [shape = 's32[1]{0}', space=sflag, size = 0x4, scoped, tag = 'scoped memory for tpu_custom_call.1']
    #allocation5 [shape = 'u8[20480]{0}', space=vmem, size = 0x5000, scoped, tag = 'input window, operand 1, single buffered']
    #allocation6 [shape = 's32[1]{0}', space=sflag, size = 0x4, scoped, tag = 'scoped memory for tpu_custom_call.1']
    #allocation7 [shape = 'u8[4096]{0}', space=vmem, size = 0x1000, scoped, tag = 'output window, operand 0, single buffered']
    #allocation8 [shape = 'u8[4096]{0}', space=vmem, size = 0x1000, scoped, tag = 'output window, operand 1, single buffered']
    #allocation9 [shape = 's32[1]{0}', space=sflag, size = 0x4, scoped, tag = 'scoped memory for tpu_custom_call.1']
    %9 = vsyncpa [#allocation3], 0
    %10 = vsyncpa [#allocation6], 0
    %11 = vsyncpa [#allocation4], 0
    %12 = vsyncpa [#allocation9], 0
    // Predicated region
    $region2: #{tpu_custom_call.1} parent=1 // pred_check
      _
    $region3: #{tpu_custom_call.1} parent=1 // pred_check_branch
      %14 = sbr.rel (0) target = $region5
    $region4: #{tpu_custom_call.1} parent=1 // pred_region
      %16 = vsyncadd [#allocation3], 256
      %s17 = sshll.u32 %s0, 4
      %s18 = int_to_ptr.hbm [resolvable:$true] %s17
      %s19 = sshll.u32 [#allocation2], 4
      %s20 = int_to_ptr.vmem [resolvable:$true] %s19
      %25 = dma.hbm_to_vmem [thread:$0]  %s18, 384, %s20, [#allocation3], 128, 128, 8
    $region5: #{tpu_custom_call.1} parent=1 // pred_fallthru
      _
    // Predicated region
    $region6: #{tpu_custom_call.1} parent=1 // pred_check
      _
    $region7: #{tpu_custom_call.1} parent=1 // pred_check_branch
      %27 = sbr.rel (0) target = $region9
    $region8: #{tpu_custom_call.1} parent=1 // pred_region
      %29 = vsyncadd [#allocation6], 0
      %s30 = sshll.u32 %s1, 4
      %s31 = int_to_ptr.hbm [resolvable:$true] %s30
      %s32 = sshll.u32 [#allocation5], 4
      %s33 = int_to_ptr.vmem [resolvable:$true] %s32
      %38 = dma.hbm_to_vmem [thread:$0]  %s31, 640, %s33, [#allocation6], 128, 128, 8
    $region9: #{tpu_custom_call.1} parent=1 // pred_fallthru
      _
    // Predicated region
    $region10: #{tpu_custom_call.1} parent=1 // pred_check
      _
    $region11: #{tpu_custom_call.1} parent=1 // pred_check_branch
      %40 = sbr.rel (0) target = $region13
    $region12: #{tpu_custom_call.1} parent=1 // pred_region
      %42 = dma.done [#allocation3], 640
    $region13: #{tpu_custom_call.1} parent=1 // pred_fallthru
      _
    // Predicated region
    $region14: #{tpu_custom_call.1} parent=1 // pred_check
      _
    $region15: #{tpu_custom_call.1} parent=1 // pred_check_branch
      %44 = sbr.rel (0) target = $region17
    $region16: #{tpu_custom_call.1} parent=1 // pred_region
      %46 = dma.done [#allocation6], 640
    $region17: #{tpu_custom_call.1} parent=1 // pred_fallthru
      _
    %p47 = scmp.eq.s32.totalorder 0, 0
    // Predicated region
    $region18: #{tpu_custom_call.1} parent=1 // pred_check
      %p48 = pneg %p47
    $region19: #{tpu_custom_call.1} parent=1 // pred_check_branch
      %50 = sbr.rel (%p48) target = $region21
    $region20: #{tpu_custom_call.1} parent=1 // pred_region
      %51 = vst [vmem:[#allocation7] sm:$0xff] 0.0
      %52 = vst [vmem:[#allocation8] sm:$0xff] 0.0
      %v53 = vlaneseq
      %v54 = vshrl.u32 %v53, 7
      %v55 = vadd.s32 %v54, 8
      %v56 = vadd.s32 %v54, 16
      %v57 = vadd.s32 %v54, 24
      %v58 = vadd.s32 %v54, 32
      %vm59 = vcmp.lt.s32.totalorder %v54, 24
      %vm60 = vcmp.lt.s32.totalorder %v55, 24
      %vm61 = vcmp.lt.s32.totalorder %v56, 24
      %vm62 = vcmp.lt.s32.totalorder %v57, 24
      %vm63 = vcmp.lt.s32.totalorder %v58, 24
      %v64 = vld [vmem:[#allocation2] sm:$0xff]
      %v65 = vld [vmem:[#allocation2 + $0x8] sm:$0xff]
      %v66 = vld [vmem:[#allocation2 + $0x10] sm:$0xff]
      %v67 = vld [vmem:[#allocation2 + $0x18] sm:$0xff]
      %v68 = vld [vmem:[#allocation2 + $0x20] sm:$0xff]
      %v69 = vsel %vm59, 1, 0
      %v70 = vsel %vm60, 1, 0
      %v71 = vsel %vm61, 1, 0
      %v72 = vsel %vm62, 1, 0
      %v73 = vsel %vm63, 1, 0
      %vm74 = vcmp.eq.s32.totalorder %v69, 1
      %vm75 = vcmp.eq.s32.totalorder %v70, 1
      %vm76 = vcmp.eq.s32.totalorder %v71, 1
      %vm77 = vcmp.eq.s32.totalorder %v72, 1
      %vm78 = vcmp.eq.s32.totalorder %v73, 1
      %v79 = vsel %vm74, %v64, 0.0
      %v80 = vsel %vm75, %v65, 0.0
      %v81 = vsel %vm76, %v66, 0.0
      %v82 = vsel %vm77, %v67, 0.0
      %v83 = vsel %vm78, %v68, 0.0
      %v84 = vld [vmem:[#allocation7] sm:$0xff]
      %v85 = vadd.f32 %v79, %v80
      %v86 = vadd.f32 %v85, %v81
      %v87 = vadd.f32 %v86, %v82
      %v88 = vadd.f32 %v87, %v83
      %v89 = vadd.f32 %v84, %v88
      %90 = vst [vmem:[#allocation7] sm:$0xff] %v89
      %vm91 = vcmp.lt.s32.totalorder %v54, 36
      %vm92 = vcmp.lt.s32.totalorder %v55, 36
      %vm93 = vcmp.lt.s32.totalorder %v56, 36
      %vm94 = vcmp.lt.s32.totalorder %v57, 36
      %vm95 = vcmp.lt.s32.totalorder %v58, 36
      %v96 = vld [vmem:[#allocation5] sm:$0xff]
      %v97 = vld [vmem:[#allocation5 + $0x8] sm:$0xff]
      %v98 = vld [vmem:[#allocation5 + $0x10] sm:$0xff]
      %v99 = vld [vmem:[#allocation5 + $0x18] sm:$0xff]
      %v100 = vld [vmem:[#allocation5 + $0x20] sm:$0xff]
      %v101 = vsel %vm91, 1, 0
      %v102 = vsel %vm92, 1, 0
      %v103 = vsel %vm93, 1, 0
      %v104 = vsel %vm94, 1, 0
      %v105 = vsel %vm95, 1, 0
      %vm106 = vcmp.eq.s32.totalorder %v101, 1
      %vm107 = vcmp.eq.s32.totalorder %v102, 1
      %vm108 = vcmp.eq.s32.totalorder %v103, 1
      %vm109 = vcmp.eq.s32.totalorder %v104, 1
      %vm110 = vcmp.eq.s32.totalorder %v105, 1
      %v111 = vsel %vm106, %v96, 0.0
      %v112 = vsel %vm107, %v97, 0.0
      %v113 = vsel %vm108, %v98, 0.0
      %v114 = vsel %vm109, %v99, 0.0
      %v115 = vsel %vm110, %v100, 0.0
      %v116 = vld [vmem:[#allocation8] sm:$0xff]
      %v117 = vadd.f32 %v111, %v112
      %v118 = vadd.f32 %v117, %v113
      %v119 = vadd.f32 %v118, %v114
      %v120 = vadd.f32 %v119, %v115
      %v121 = vadd.f32 %v116, %v120
      %122 = vst [vmem:[#allocation8] sm:$0xff] %v121
    $region21: #{tpu_custom_call.1} parent=1 // pred_fallthru
      _
    // Predicated region
    $region22: #{tpu_custom_call.1} parent=1 // pred_check
      _
    $region23: #{tpu_custom_call.1} parent=1 // pred_check_branch
      %124 = sbr.rel (0) target = $region25
    $region24: #{tpu_custom_call.1} parent=1 // pred_region
      %126 = vsyncadd [#allocation4], 0
      %s128 = sshll.u32 [#allocation7], 4
      %s129 = int_to_ptr.vmem [resolvable:$true] %s128
      %s130 = sshll.u32 %s2, 4
      %s131 = int_to_ptr.hbm [resolvable:$true] %s130
      %133 = dma.vmem_to_hbm [thread:$0]  %s129, 128, %s131, [#allocation4]
    $region25: #{tpu_custom_call.1} parent=1 // pred_fallthru
      _
    // Predicated region
    $region26: #{tpu_custom_call.1} parent=1 // pred_check
      _
    $region27: #{tpu_custom_call.1} parent=1 // pred_check_branch
      %135 = sbr.rel (0) target = $region29
    $region28: #{tpu_custom_call.1} parent=1 // pred_region
      %137 = vsyncadd [#allocation9], 0
      %s139 = sshll.u32 [#allocation8], 4
      %s140 = int_to_ptr.vmem [resolvable:$true] %s139
      %s141 = sshll.u32 %s3, 4
      %s142 = int_to_ptr.hbm [resolvable:$true] %s141
      %144 = dma.vmem_to_hbm [thread:$0]  %s140, 128, %s142, [#allocation9]
    $region29: #{tpu_custom_call.1} parent=1 // pred_fallthru
      _
    // Predicated region
    $region30: #{tpu_custom_call.1} parent=1 // pred_check
      _
    $region31: #{tpu_custom_call.1} parent=1 // pred_check_branch
      %146 = sbr.rel (0) target = $region33
    $region32: #{tpu_custom_call.1} parent=1 // pred_region
      %148 = dma.done [#allocation4], 128
    $region33: #{tpu_custom_call.1} parent=1 // pred_fallthru
      _
    // Predicated region
    $region34: #{tpu_custom_call.1} parent=1 // pred_check
      _
    $region35: #{tpu_custom_call.1} parent=1 // pred_check_branch
      %150 = sbr.rel (0) target = $region37
    $region36: #{tpu_custom_call.1} parent=1 // pred_region
      %152 = dma.done [#allocation9], 128
    $region37: #{tpu_custom_call.1} parent=1 // pred_fallthru
      _
    %153 = vsyncpa [#allocation3], 1
    %154 = vsyncpa [#allocation6], 1
    %155 = vsyncpa [#allocation4], 1
    %156 = vsyncpa [#allocation9], 1

</llo_original>
